<compile_context>
chip_gen: v7x
topology: tpu7x:2x2x1
jax: 0.10.0
libtpu: 0.0.40
codegen_flags: <defaults>
</compile_context>

<pallas_src>
import functools

import jax
import jax.numpy as jnp
from jax.experimental import pallas as pl
from jax.experimental.pallas import tpu as pltpu


def _round_up(x, m):
    return ((x + m - 1) // m) * m


def _mlcl_kernel(pair_i_ref, pair_j_ref,            # SMEM scalar prefetch: pair-tile -> block maps
                 fa_ref, fb_ref, ta_ref, tb_ref,    # (tile_c, tile_n) VMEM input blocks
                 out_ref,                           # (tile_c, 1) per-class log-loss
                 sp_ref, sn_ref,                    # (tile_c, 1) VMEM accumulators
                 *, scale, margin, n_valid, tile_n):
    p = pl.program_id(1)
    last_p = pl.num_programs(1) - 1

    # New class tile -> reset the per-class positive/negative accumulators.
    @pl.when(p == 0)
    def _():
        sp_ref[...] = jnp.zeros_like(sp_ref)
        sn_ref[...] = jnp.zeros_like(sn_ref)

    eps = jnp.float32(1e-12)
    one = jnp.float32(1.0)
    fa = fa_ref[...]
    fb = fb_ref[...]
    # F.normalize of a scalar "embedding": x / max(|x|, eps).  For |x| >= eps this
    # is exactly the sign (no divide needed); tiny |x| keeps the x/eps behaviour.
    fa_n = jnp.where(jnp.abs(fa) >= eps, jnp.where(fa > 0, one, -one), fa * jnp.float32(1e12))
    fb_n = jnp.where(jnp.abs(fb) >= eps, jnp.where(fb > 0, one, -one), fb * jnp.float32(1e12))

    # Pair tensors: classes on the leading dim, pair column (b) lane-dense.
    sim = fa_n[:, :, None] * fb_n[:, None, :]                   # (tile_c, tn, tn)
    same = ta_ref[...][:, :, None] == tb_ref[...][:, None, :]   # (tile_c, tn, tn)

    # Strict upper triangle (b > a) in GLOBAL sample indices; also drops padded
    # samples (b < n_valid, and a < b implies a < n_valid).
    i0 = pair_i_ref[p] * tile_n
    j0 = pair_j_ref[p] * tile_n
    a_idx = i0 + jax.lax.broadcasted_iota(jnp.int32, (1, tile_n, tile_n), 1)
    b_idx = j0 + jax.lax.broadcasted_iota(jnp.int32, (1, tile_n, tile_n), 2)
    gt = jnp.logical_and(b_idx > a_idx, b_idx < n_valid)

    pos = jnp.logical_and(gt, same)
    neg = jnp.logical_and(gt, jnp.logical_not(same))

    # Single fused exp (one EUP op per pair).  Select on the ARGUMENT (default 0)
    # so masked-out pairs stay finite (exp(0)=1); the mask-gated sums below
    # zero their contribution.
    arg_p = (-scale) * jnp.maximum(1.0 + margin - sim, 0.0) * (sim - (1.0 - margin))
    arg_n = scale * jnp.maximum(sim + margin, 0.0) * (sim - margin)
    e = jnp.exp(jnp.where(pos, arg_p, jnp.where(neg, arg_n, 0.0)))

    sp_ref[...] += jnp.sum(jnp.sum(jnp.where(pos, e, 0.0), axis=2), axis=1, keepdims=True)
    sn_ref[...] += jnp.sum(jnp.sum(jnp.where(neg, e, 0.0), axis=2), axis=1, keepdims=True)

    # Last pair tile for this class tile -> finalize.  (Padded classes give
    # Sn == 0 -> log(1) == 0, and are sliced off in the wrapper anyway.)
    @pl.when(p == last_p)
    def _():
        out_ref[...] = jnp.log(1.0 + sp_ref[...] * sn_ref[...])


def multi_label_circle_loss(output, target, weights=None, *, scale=32.0, margin=0.25,
                            tile_n=None, tile_c=None, vmem_limit_bytes=None):
    """output, target: (N, C) arrays.  Returns the summed per-class CircleLoss (f32 scalar)."""
    output = jnp.asarray(output, jnp.float32)
    target = jnp.asarray(target, jnp.float32)
    N, C = output.shape
    if N < 2 or C == 0:
        return jnp.float32(0.0)

    # --- tile sizing: ~1 MiB per (tile_c, tile_n, tile_n) pair tile, safe for
    # v5e/v6e (128 MiB VMEM) and v7x (64 MiB VMEM). ---
    if tile_n is None:
        tile_n = N if N <= 128 else 128          # lane axis: full extent or 128-multiple
    if tile_c is None:
        budget = max(8, (1 << 20) // 4 // (tile_n * tile_n))
        tile_c = C if C <= budget else max(8, min((budget // 8) * 8, 1024))
    N_pad = N if tile_n == N else _round_up(N, tile_n)
    C_pad = C if tile_c == C else _round_up(C, tile_c)
    if (N_pad, C_pad) != (N, C):
        output = jnp.pad(output, ((0, N_pad - N), (0, C_pad - C)))
        target = jnp.pad(target, ((0, N_pad - N), (0, C_pad - C)))

    # Classes on sublanes, samples on lanes (pair-column axis stays lane-dense).
    f_cn = jnp.transpose(output)   # (C_pad, N_pad)
    t_cn = jnp.transpose(target)   # (C_pad, N_pad)

    # Triangular pair-tile enumeration: only (ti, tj) with tj >= ti can hold b > a pairs.
    gi = N_pad // tile_n
    gc = C_pad // tile_c
    pairs = [(ti, tj) for ti in range(gi) for tj in range(ti, gi)]
    pair_i = jnp.asarray([ij[0] for ij in pairs], jnp.int32)
    pair_j = jnp.asarray([ij[1] for ij in pairs], jnp.int32)
    n_pair_tiles = len(pairs)

    if vmem_limit_bytes is None:
        vmem_limit_bytes = 32 * 1024 * 1024      # explicit, generation-safe scoped limit

    kernel = functools.partial(_mlcl_kernel, scale=float(scale), margin=float(margin),
                               n_valid=N, tile_n=tile_n)

    per_class = pl.pallas_call(
        kernel,
        out_shape=jax.ShapeDtypeStruct((C_pad, 1), jnp.float32),
        grid_spec=pltpu.PrefetchScalarGridSpec(
            num_scalar_prefetch=2,
            grid=(gc, n_pair_tiles),
            in_specs=[
                pl.BlockSpec((tile_c, tile_n), lambda c, p, pi, pj: (c, pi[p])),  # feats, rows "a"
                pl.BlockSpec((tile_c, tile_n), lambda c, p, pi, pj: (c, pj[p])),  # feats, rows "b"
                pl.BlockSpec((tile_c, tile_n), lambda c, p, pi, pj: (c, pi[p])),  # labels, rows "a"
                pl.BlockSpec((tile_c, tile_n), lambda c, p, pi, pj: (c, pj[p])),  # labels, rows "b"
            ],
            out_specs=pl.BlockSpec((tile_c, 1), lambda c, p, pi, pj: (c, 0)),
            scratch_shapes=[pltpu.VMEM((tile_c, 1), jnp.float32),
                            pltpu.VMEM((tile_c, 1), jnp.float32)],
        ),
        compiler_params=pltpu.CompilerParams(
            dimension_semantics=("parallel", "arbitrary"),
            vmem_limit_bytes=vmem_limit_bytes),
    )(pair_i, pair_j, f_cn, f_cn, t_cn, t_cn)

    per_class = per_class[:C, 0]
    if weights is not None:
        per_class = per_class * jnp.asarray(weights, jnp.float32)
    return jnp.sum(per_class)


def _ref_loss(output, target, scale=32.0, margin=0.25):
    """Pure-JAX reference mirroring the (intended) PyTorch per-class loop."""
    output = jnp.asarray(output, jnp.float32)
    target = jnp.asarray(target, jnp.float32)
    N, C = output.shape
    triu = jnp.triu(jnp.ones((N, N), dtype=bool), 1)
    total = jnp.float32(0.0)
    for i in range(C):
        f = output[:, i]
        t = target[:, i]
        fn = f / jnp.maximum(jnp.abs(f), 1e-12)
        sim = jnp.outer(fn, fn)
        same = t[:, None] == t[None, :]
        pos = same & triu
        neg = (~same) & triu
        alpha_p = jnp.maximum(-sim + 1.0 + margin, 0.0)
        alpha_n = jnp.maximum(sim + margin, 0.0)
        lp = jnp.sum(jnp.where(pos, jnp.exp(-scale * alpha_p * (sim - (1.0 - margin))), 0.0))
        ln = jnp.sum(jnp.where(neg, jnp.exp(scale * alpha_n * (sim - margin)), 0.0))
        total = total + jnp.log(1.0 + lp * ln)
    return total


def _make_inputs(key, n, c):
    k1, k2 = jax.random.split(key)
    target = jax.random.bernoulli(k1, 0.5, (n, c)).astype(jnp.float32)
    magnitude = jnp.abs(jax.random.normal(k2, (n, c), dtype=jnp.float32)) + 0.1
    # Same-label samples share a sign so the f32 loss stays finite
    # (cosine of scalar features is just a sign product).
    output = magnitude * (2.0 * target - 1.0)
    return output, target


if __name__ == "__main__":
    key = jax.random.PRNGKey(0)
    k_small, k_big = jax.random.split(key)

    # Small case (N=8 samples, C=4 labels): single class tile, single pair tile.
    out_s, tgt_s = _make_inputs(k_small, 8, 4)
    loss_s = jax.block_until_ready(multi_label_circle_loss(out_s, tgt_s))
    ref_s = _ref_loss(out_s, tgt_s)
    assert jnp.allclose(loss_s, ref_s, rtol=1e-4, atol=1e-4), (loss_s, ref_s)

    # Larger case (N=200, C=20): exercises triangular pair tiling, sample padding
    # (N_pad=256), class tiling/padding (tile_c=16, C_pad=32) and the cross-tile
    # scratch accumulators.
    out_b, tgt_b = _make_inputs(k_big, 200, 20)
    loss_b = jax.block_until_ready(multi_label_circle_loss(out_b, tgt_b))
    ref_b = _ref_loss(out_b, tgt_b)
    assert jnp.allclose(loss_b, ref_b, rtol=1e-4, atol=1e-4), (loss_b, ref_b)

    print("KERNEL_OK")
</pallas_src>

<mosaic_0001>
module attributes {stable_mosaic.version = 11 : i64} {
  func.func @_mlcl_kernel(%arg0: i32, %arg1: i32, %arg2: memref<1xi32, #tpu.memory_space<smem>>, %arg3: memref<1xi32, #tpu.memory_space<smem>>, %arg4: memref<4x8xf32, #tpu.memory_space<vmem>>, %arg5: memref<4x8xf32, #tpu.memory_space<vmem>>, %arg6: memref<4x8xf32, #tpu.memory_space<vmem>>, %arg7: memref<4x8xf32, #tpu.memory_space<vmem>>, %arg8: memref<4x1xf32, #tpu.memory_space<vmem>>, %arg9: memref<4x1xf32, #tpu.memory_space<vmem>>, %arg10: memref<4x1xf32, #tpu.memory_space<vmem>>) attributes {dimension_semantics = [#tpu.dimension_semantics<parallel>, #tpu.dimension_semantics<arbitrary>], iteration_bounds = array<i64: 1, 1>, scalar_prefetch = 2 : i64, scratch_operands = 2 : i64, tpu.core_type = #tpu.core_type<tc>, window_params = [{transform_indices = @transform_0, window_bounds = array<i64: 4, 8>}, {transform_indices = @transform_1, window_bounds = array<i64: 4, 8>}, {transform_indices = @transform_2, window_bounds = array<i64: 4, 8>}, {transform_indices = @transform_3, window_bounds = array<i64: 4, 8>}, {transform_indices = @transform_4, window_bounds = array<i64: 4, 1>}]} {
    %c0_i32 = arith.constant 0 : i32
    %0 = arith.cmpi eq, %arg1, %c0_i32 : i32
    %1 = arith.extui %0 : i1 to i32
    %c0_i32_0 = arith.constant 0 : i32
    %2 = arith.cmpi ne, %1, %c0_i32_0 : i32
    scf.if %2 {
      %cst_47 = arith.constant 0.000000e+00 : f32
      %103 = vector.broadcast %cst_47 : f32 to vector<4x1xf32>
      %c0_48 = arith.constant 0 : index
      %c0_49 = arith.constant 0 : index
      %104 = vector.load %arg9[%c0_48, %c0_49] : memref<4x1xf32, #tpu.memory_space<vmem>>, vector<4x1xf32>
      tpu.vector_store %arg9[%c0_48, %c0_49], %103 {strides = array<i32>} : memref<4x1xf32, #tpu.memory_space<vmem>>, vector<4x1xf32>,
      %cst_50 = arith.constant 0.000000e+00 : f32
      %105 = vector.broadcast %cst_50 : f32 to vector<4x1xf32>
      %c0_51 = arith.constant 0 : index
      %c0_52 = arith.constant 0 : index
      %106 = vector.load %arg10[%c0_51, %c0_52] : memref<4x1xf32, #tpu.memory_space<vmem>>, vector<4x1xf32>
      tpu.vector_store %arg10[%c0_51, %c0_52], %105 {strides = array<i32>} : memref<4x1xf32, #tpu.memory_space<vmem>>, vector<4x1xf32>,
    } else {
    }
    %c0 = arith.constant 0 : index
    %c0_1 = arith.constant 0 : index
    %3 = vector.load %arg4[%c0, %c0_1] : memref<4x8xf32, #tpu.memory_space<vmem>>, vector<4x8xf32>
    %c0_2 = arith.constant 0 : index
    %c0_3 = arith.constant 0 : index
    %4 = vector.load %arg5[%c0_2, %c0_3] : memref<4x8xf32, #tpu.memory_space<vmem>>, vector<4x8xf32>
    %5 = math.absf %3 : vector<4x8xf32>
    %cst = arith.constant 9.99999996E-13 : f32
    %6 = vector.broadcast %cst : f32 to vector<4x8xf32>
    %7 = arith.cmpf oge, %5, %6 : vector<4x8xf32>
    %cst_4 = arith.constant 0.000000e+00 : f32
    %8 = vector.broadcast %cst_4 : f32 to vector<4x8xf32>
    %9 = arith.cmpf ogt, %3, %8 : vector<4x8xf32>
    %cst_5 = arith.constant 0.000000e+00 : f32
    %cst_6 = arith.constant 1.000000e+00 : f32
    %10 = arith.subf %cst_5, %cst_6 : f32
    %cst_7 = arith.constant 1.000000e+00 : f32
    %11 = vector.broadcast %cst_7 : f32 to vector<4x8xf32>
    %12 = vector.broadcast %10 : f32 to vector<4x8xf32>
    %13 = arith.select %9, %11, %12 : vector<4x8xi1>, vector<4x8xf32>
    %cst_8 = arith.constant 9.99999995E+11 : f32
    %14 = vector.broadcast %cst_8 : f32 to vector<4x8xf32>
    %15 = arith.mulf %3, %14 : vector<4x8xf32>
    %16 = arith.select %7, %13, %15 : vector<4x8xi1>, vector<4x8xf32>
    %17 = math.absf %4 : vector<4x8xf32>
    %cst_9 = arith.constant 9.99999996E-13 : f32
    %18 = vector.broadcast %cst_9 : f32 to vector<4x8xf32>
    %19 = arith.cmpf oge, %17, %18 : vector<4x8xf32>
    %cst_10 = arith.constant 0.000000e+00 : f32
    %20 = vector.broadcast %cst_10 : f32 to vector<4x8xf32>
    %21 = arith.cmpf ogt, %4, %20 : vector<4x8xf32>
    %cst_11 = arith.constant 0.000000e+00 : f32
    %cst_12 = arith.constant 1.000000e+00 : f32
    %22 = arith.subf %cst_11, %cst_12 : f32
    %cst_13 = arith.constant 1.000000e+00 : f32
    %23 = vector.broadcast %cst_13 : f32 to vector<4x8xf32>
    %24 = vector.broadcast %22 : f32 to vector<4x8xf32>
    %25 = arith.select %21, %23, %24 : vector<4x8xi1>, vector<4x8xf32>
    %cst_14 = arith.constant 9.99999995E+11 : f32
    %26 = vector.broadcast %cst_14 : f32 to vector<4x8xf32>
    %27 = arith.mulf %4, %26 : vector<4x8xf32>
    %28 = arith.select %19, %25, %27 : vector<4x8xi1>, vector<4x8xf32>
    %29 = vector.shape_cast %16 : vector<4x8xf32> to vector<4x8x1xf32>
    %30 = vector.shape_cast %28 : vector<4x8xf32> to vector<4x1x8xf32>
    %31 = vector.broadcast %29 : vector<4x8x1xf32> to vector<4x8x8xf32>
    %32 = vector.broadcast %30 : vector<4x1x8xf32> to vector<4x8x8xf32>
    %33 = arith.mulf %31, %32 : vector<4x8x8xf32>
    %c0_15 = arith.constant 0 : index
    %c0_16 = arith.constant 0 : index
    %34 = vector.load %arg6[%c0_15, %c0_16] : memref<4x8xf32, #tpu.memory_space<vmem>>, vector<4x8xf32>
    %35 = vector.shape_cast %34 : vector<4x8xf32> to vector<4x8x1xf32>
    %c0_17 = arith.constant 0 : index
    %c0_18 = arith.constant 0 : index
    %36 = vector.load %arg7[%c0_17, %c0_18] : memref<4x8xf32, #tpu.memory_space<vmem>>, vector<4x8xf32>
    %37 = vector.shape_cast %36 : vector<4x8xf32> to vector<4x1x8xf32>
    %38 = vector.broadcast %35 : vector<4x8x1xf32> to vector<4x8x8xf32>
    %39 = vector.broadcast %37 : vector<4x1x8xf32> to vector<4x8x8xf32>
    %40 = arith.cmpf oeq, %38, %39 : vector<4x8x8xf32>
    %41 = arith.index_cast %arg1 : i32 to index
    %42 = memref.load %arg2[%41] : memref<1xi32, #tpu.memory_space<smem>>
    %c8_i32 = arith.constant 8 : i32
    %43 = arith.muli %42, %c8_i32 : i32
    %44 = arith.index_cast %arg1 : i32 to index
    %45 = memref.load %arg3[%44] : memref<1xi32, #tpu.memory_space<smem>>
    %c8_i32_19 = arith.constant 8 : i32
    %46 = arith.muli %45, %c8_i32_19 : i32
    %47 = tpu.iota {dimensions = array<i32: 1>} : vector<1x8x8xi32>
    %48 = vector.broadcast %43 : i32 to vector<1x8x8xi32>
    %49 = arith.addi %48, %47 : vector<1x8x8xi32>
    %50 = tpu.iota {dimensions = array<i32: 2>} : vector<1x8x8xi32>
    %51 = vector.broadcast %46 : i32 to vector<1x8x8xi32>
    %52 = arith.addi %51, %50 : vector<1x8x8xi32>
    %53 = arith.cmpi sgt, %52, %49 : vector<1x8x8xi32>
    %c8_i32_20 = arith.constant 8 : i32
    %54 = vector.broadcast %c8_i32_20 : i32 to vector<1x8x8xi32>
    %55 = arith.cmpi slt, %52, %54 : vector<1x8x8xi32>
    %56 = arith.andi %53, %55 : vector<1x8x8xi1>
    %57 = vector.broadcast %56 : vector<1x8x8xi1> to vector<4x8x8xi1>
    %58 = arith.andi %57, %40 : vector<4x8x8xi1>
    %cst_21 = arith.constant dense<true> : vector<4x8x8xi1>
    %59 = arith.xori %40, %cst_21 : vector<4x8x8xi1>
    %60 = vector.broadcast %56 : vector<1x8x8xi1> to vector<4x8x8xi1>
    %61 = arith.andi %60, %59 : vector<4x8x8xi1>
    %cst_22 = arith.constant 1.250000e+00 : f32
    %62 = vector.broadcast %cst_22 : f32 to vector<4x8x8xf32>
    %63 = arith.subf %62, %33 : vector<4x8x8xf32>
    %cst_23 = arith.constant 0.000000e+00 : f32
    %64 = vector.broadcast %cst_23 : f32 to vector<4x8x8xf32>
    %65 = arith.maximumf %63, %64 : vector<4x8x8xf32>
    %cst_24 = arith.constant -3.200000e+01 : f32
    %66 = vector.broadcast %cst_24 : f32 to vector<4x8x8xf32>
    %67 = arith.mulf %66, %65 : vector<4x8x8xf32>
    %cst_25 = arith.constant 7.500000e-01 : f32
    %68 = vector.broadcast %cst_25 : f32 to vector<4x8x8xf32>
    %69 = arith.subf %33, %68 : vector<4x8x8xf32>
    %70 = arith.mulf %67, %69 : vector<4x8x8xf32>
    %cst_26 = arith.constant 2.500000e-01 : f32
    %71 = vector.broadcast %cst_26 : f32 to vector<4x8x8xf32>
    %72 = arith.addf %33, %71 : vector<4x8x8xf32>
    %cst_27 = arith.constant 0.000000e+00 : f32
    %73 = vector.broadcast %cst_27 : f32 to vector<4x8x8xf32>
    %74 = arith.maximumf %72, %73 : vector<4x8x8xf32>
    %cst_28 = arith.constant 3.200000e+01 : f32
    %75 = vector.broadcast %cst_28 : f32 to vector<4x8x8xf32>
    %76 = arith.mulf %75, %74 : vector<4x8x8xf32>
    %cst_29 = arith.constant 2.500000e-01 : f32
    %77 = vector.broadcast %cst_29 : f32 to vector<4x8x8xf32>
    %78 = arith.subf %33, %77 : vector<4x8x8xf32>
    %79 = arith.mulf %76, %78 : vector<4x8x8xf32>
    %cst_30 = arith.constant 0.000000e+00 : f32
    %80 = vector.broadcast %cst_30 : f32 to vector<4x8x8xf32>
    %81 = arith.select %61, %79, %80 : vector<4x8x8xi1>, vector<4x8x8xf32>
    %82 = arith.select %58, %70, %81 : vector<4x8x8xi1>, vector<4x8x8xf32>
    %83 = math.exp %82 : vector<4x8x8xf32>
    %c0_31 = arith.constant 0 : index
    %c0_32 = arith.constant 0 : index
    %84 = vector.load %arg9[%c0_31, %c0_32] : memref<4x1xf32, #tpu.memory_space<vmem>>, vector<4x1xf32>
    %cst_33 = arith.constant 0.000000e+00 : f32
    %85 = vector.broadcast %cst_33 : f32 to vector<4x8x8xf32>
    %86 = arith.select %58, %83, %85 : vector<4x8x8xi1>, vector<4x8x8xf32>
    %cst_34 = arith.constant dense<0.000000e+00> : vector<4x8xf32>
    %87 = vector.multi_reduction <add>, %86, %cst_34 [2] : vector<4x8x8xf32> to vector<4x8xf32>
    %cst_35 = arith.constant dense<0.000000e+00> : vector<4xf32>
    %88 = vector.multi_reduction <add>, %87, %cst_35 [1] : vector<4x8xf32> to vector<4xf32>
    %89 = vector.shape_cast %88 : vector<4xf32> to vector<4x1xf32>
    %90 = arith.addf %84, %89 : vector<4x1xf32>
    %c0_36 = arith.constant 0 : index
    %c0_37 = arith.constant 0 : index
    %91 = vector.load %arg9[%c0_36, %c0_37] : memref<4x1xf32, #tpu.memory_space<vmem>>, vector<4x1xf32>
    tpu.vector_store %arg9[%c0_36, %c0_37], %90 {strides = array<i32>} : memref<4x1xf32, #tpu.memory_space<vmem>>, vector<4x1xf32>,
    %c0_38 = arith.constant 0 : index
    %c0_39 = arith.constant 0 : index
    %92 = vector.load %arg10[%c0_38, %c0_39] : memref<4x1xf32, #tpu.memory_space<vmem>>, vector<4x1xf32>
    %cst_40 = arith.constant 0.000000e+00 : f32
    %93 = vector.broadcast %cst_40 : f32 to vector<4x8x8xf32>
    %94 = arith.select %61, %83, %93 : vector<4x8x8xi1>, vector<4x8x8xf32>
    %cst_41 = arith.constant dense<0.000000e+00> : vector<4x8xf32>
    %95 = vector.multi_reduction <add>, %94, %cst_41 [2] : vector<4x8x8xf32> to vector<4x8xf32>
    %cst_42 = arith.constant dense<0.000000e+00> : vector<4xf32>
    %96 = vector.multi_reduction <add>, %95, %cst_42 [1] : vector<4x8xf32> to vector<4xf32>
    %97 = vector.shape_cast %96 : vector<4xf32> to vector<4x1xf32>
    %98 = arith.addf %92, %97 : vector<4x1xf32>
    %c0_43 = arith.constant 0 : index
    %c0_44 = arith.constant 0 : index
    %99 = vector.load %arg10[%c0_43, %c0_44] : memref<4x1xf32, #tpu.memory_space<vmem>>, vector<4x1xf32>
    tpu.vector_store %arg10[%c0_43, %c0_44], %98 {strides = array<i32>} : memref<4x1xf32, #tpu.memory_space<vmem>>, vector<4x1xf32>,
    %c0_i32_45 = arith.constant 0 : i32
    %100 = arith.cmpi eq, %arg1, %c0_i32_45 : i32
    %101 = arith.extui %100 : i1 to i32
    %c0_i32_46 = arith.constant 0 : i32
    %102 = arith.cmpi ne, %101, %c0_i32_46 : i32
    scf.if %102 {
      %c0_47 = arith.constant 0 : index
      %c0_48 = arith.constant 0 : index
      %103 = vector.load %arg9[%c0_47, %c0_48] : memref<4x1xf32, #tpu.memory_space<vmem>>, vector<4x1xf32>
      %c0_49 = arith.constant 0 : index
      %c0_50 = arith.constant 0 : index
      %104 = vector.load %arg10[%c0_49, %c0_50] : memref<4x1xf32, #tpu.memory_space<vmem>>, vector<4x1xf32>
      %105 = arith.mulf %103, %104 : vector<4x1xf32>
      %cst_51 = arith.constant 1.000000e+00 : f32
      %106 = vector.broadcast %cst_51 : f32 to vector<4x1xf32>
      %107 = arith.addf %106, %105 : vector<4x1xf32>
      %108 = math.log %107 : vector<4x1xf32>
      %c0_52 = arith.constant 0 : index
      %c0_53 = arith.constant 0 : index
      %109 = vector.load %arg8[%c0_52, %c0_53] : memref<4x1xf32, #tpu.memory_space<vmem>>, vector<4x1xf32>
      tpu.vector_store %arg8[%c0_52, %c0_53], %108 {strides = array<i32>} : memref<4x1xf32, #tpu.memory_space<vmem>>, vector<4x1xf32>,
    } else {
    }
    return
  }
  func.func @transform_0(%arg0: i32, %arg1: i32, %arg2: memref<1xi32, #tpu.memory_space<smem>>, %arg3: memref<1xi32, #tpu.memory_space<smem>>) -> (i32, i32) {
    %0 = arith.index_cast %arg1 : i32 to index
    %1 = memref.load %arg2[%0] : memref<1xi32, #tpu.memory_space<smem>>
    %c0_i32 = arith.constant 0 : i32
    return %arg0, %1 : i32, i32
  }
  func.func @transform_1(%arg0: i32, %arg1: i32, %arg2: memref<1xi32, #tpu.memory_space<smem>>, %arg3: memref<1xi32, #tpu.memory_space<smem>>) -> (i32, i32) {
    %0 = arith.index_cast %arg1 : i32 to index
    %1 = memref.load %arg3[%0] : memref<1xi32, #tpu.memory_space<smem>>
    %c0_i32 = arith.constant 0 : i32
    return %arg0, %1 : i32, i32
  }
  func.func @transform_2(%arg0: i32, %arg1: i32, %arg2: memref<1xi32, #tpu.memory_space<smem>>, %arg3: memref<1xi32, #tpu.memory_space<smem>>) -> (i32, i32) {
    %0 = arith.index_cast %arg1 : i32 to index
    %1 = memref.load %arg2[%0] : memref<1xi32, #tpu.memory_space<smem>>
    %c0_i32 = arith.constant 0 : i32
    return %arg0, %1 : i32, i32
  }
  func.func @transform_3(%arg0: i32, %arg1: i32, %arg2: memref<1xi32, #tpu.memory_space<smem>>, %arg3: memref<1xi32, #tpu.memory_space<smem>>) -> (i32, i32) {
    %0 = arith.index_cast %arg1 : i32 to index
    %1 = memref.load %arg3[%0] : memref<1xi32, #tpu.memory_space<smem>>
    %c0_i32 = arith.constant 0 : i32
    return %arg0, %1 : i32, i32
  }
  func.func @transform_4(%arg0: i32, %arg1: i32, %arg2: memref<1xi32, #tpu.memory_space<smem>>, %arg3: memref<1xi32, #tpu.memory_space<smem>>) -> (i32, i32) {
    %c0_i32 = arith.constant 0 : i32
    %c0_i32_0 = arith.constant 0 : i32
    return %arg0, %c0_i32 : i32, i32
  }
}

</mosaic_0001>

<llo_original>
// kernel: tpu_custom_call.1
$region0: #{tpu_custom_call.1}
  #allocation0 [shape = 'u32[]', space=smem, size = 0x4, offset = 0x4, fixed_abs, tag = 'smem constant byte address 0x4 - core index']
  #allocation1 [shape = 'u32[144,128]{1,0:T(1,128)}', space=vmem, size = 0x12000, scoped, tag = 'internal scratch']
  #allocation2 [shape = 'f32[4,1]{1,0:T(4,128)}', space=vmem, size = 0x800, scoped, tag = 'scratch operand']
  #allocation3 [shape = 'f32[4,1]{1,0:T(4,128)}', space=vmem, size = 0x800, scoped, tag = 'scratch operand']
  #allocation4 [shape = 's32[1]{0}', space=sflag, size = 0x4, scoped, tag = 'scoped memory for tpu_custom_call.1']
  #allocation5 [shape = 's32[1]{0:T(128)S(6)}', space=smem, size = 0x200, scoped, tag = 'prefetched SMEM operand 0']
  #allocation6 [shape = 's32[1]{0:T(128)S(6)}', space=smem, size = 0x200, scoped, tag = 'prefetched SMEM operand 1']
  %s0 = inlined_call_operand.<no memory space> [shape: s32[1], index: 0, kind: input, shape index: {}]
  %s1 = inlined_call_operand.<no memory space> [shape: s32[1], index: 1, kind: input, shape index: {}]
  %s2 = inlined_call_operand.vmem [shape: f32[4,8], index: 2, kind: input, shape index: {}]
  %s3 = inlined_call_operand.vmem [shape: f32[4,8], index: 3, kind: input, shape index: {}]
  %s4 = inlined_call_operand.vmem [shape: f32[4,8], index: 4, kind: input, shape index: {}]
  %s5 = inlined_call_operand.vmem [shape: f32[4,8], index: 5, kind: input, shape index: {}]
  %s6 = inlined_call_operand.vmem [shape: f32[4,1], index: 6, kind: output, shape index: {}]
  %s7 = sld [smem:[#allocation0]]
  $region34: #{tpu_custom_call.1} parent=0
    _
  %s9 = ssub.s32 1, %s7
  %s10 = scalar_select 0, %s9, %s7
  %11 = sst [smem:[#allocation5]] %s0
  %12 = sst [smem:[#allocation6]] %s1
  // Predicated region
  $region2: #{tpu_custom_call.1} parent=0 // pred_check
    _
  $region3: #{tpu_custom_call.1} parent=0 // pred_check_branch
    %14 = sbr.rel (0) target = $region5
  $region4: #{tpu_custom_call.1} parent=0 // pred_region
    %s15 = sld [smem:[#allocation5]]
    %p16 = scmp.lt.s32.totalorder %s15, 0
    %s17 = scalar_select %p16, %s15, 0
    %s18 = smul.addr %s17, 4
    %s19 = scalar_lea.vmem %s2, %s18
    %s20 = sld [smem:[#allocation5]]
  $region5: #{tpu_custom_call.1} parent=0 // pred_fallthru
    _
  // Predicated region
  $region6: #{tpu_custom_call.1} parent=0 // pred_check
    _
  $region7: #{tpu_custom_call.1} parent=0 // pred_check_branch
    %22 = sbr.rel (0) target = $region9
  $region8: #{tpu_custom_call.1} parent=0 // pred_region
    %s23 = sld [smem:[#allocation6]]
    %p24 = scmp.lt.s32.totalorder %s23, 0
    %s25 = scalar_select %p24, %s23, 0
    %s26 = smul.addr %s25, 4
    %s27 = scalar_lea.vmem %s3, %s26
    %s28 = sld [smem:[#allocation6]]
  $region9: #{tpu_custom_call.1} parent=0 // pred_fallthru
    _
  // Predicated region
  $region10: #{tpu_custom_call.1} parent=0 // pred_check
    _
  $region11: #{tpu_custom_call.1} parent=0 // pred_check_branch
    %30 = sbr.rel (0) target = $region13
  $region12: #{tpu_custom_call.1} parent=0 // pred_region
    %s31 = sld [smem:[#allocation5]]
    %p32 = scmp.lt.s32.totalorder %s31, 0
    %s33 = scalar_select %p32, %s31, 0
    %s34 = smul.addr %s33, 4
    %s35 = scalar_lea.vmem %s4, %s34
    %s36 = sld [smem:[#allocation5]]
  $region13: #{tpu_custom_call.1} parent=0 // pred_fallthru
    _
  // Predicated region
  $region14: #{tpu_custom_call.1} parent=0 // pred_check
    _
  $region15: #{tpu_custom_call.1} parent=0 // pred_check_branch
    %38 = sbr.rel (0) target = $region17
  $region16: #{tpu_custom_call.1} parent=0 // pred_region
    %s39 = sld [smem:[#allocation6]]
    %p40 = scmp.lt.s32.totalorder %s39, 0
    %s41 = scalar_select %p40, %s39, 0
    %s42 = smul.addr %s41, 4
    %s43 = scalar_lea.vmem %s5, %s42
    %s44 = sld [smem:[#allocation6]]
  $region17: #{tpu_custom_call.1} parent=0 // pred_fallthru
    _
  %s45 = sld [smem:[#allocation5]]
  %p46 = scmp.lt.s32.totalorder %s45, 0
  %s47 = scalar_select %p46, %s45, 0
  %s48 = smul.addr %s47, 4
  %s49 = scalar_lea.vmem %s2, %s48
  %s50 = sld [smem:[#allocation6]]
  %p51 = scmp.lt.s32.totalorder %s50, 0
  %s52 = scalar_select %p51, %s50, 0
  %s53 = smul.addr %s52, 4
  %s54 = scalar_lea.vmem %s3, %s53
  %s55 = sld [smem:[#allocation5]]
  %p56 = scmp.lt.s32.totalorder %s55, 0
  %s57 = scalar_select %p56, %s55, 0
  %s58 = smul.addr %s57, 4
  %s59 = scalar_lea.vmem %s4, %s58
  %s60 = sld [smem:[#allocation6]]
  %p61 = scmp.lt.s32.totalorder %s60, 0
  %s62 = scalar_select %p61, %s60, 0
  %s63 = smul.addr %s62, 4
  %s64 = scalar_lea.vmem %s5, %s63
  %s65 = sld [smem:[#allocation5]]
  %p66 = scmp.lt.s32.totalorder %s65, 0
  %s67 = scalar_select %p66, %s65, 0
  %s68 = smul.addr %s67, 4
  %s69 = scalar_lea.vmem %s2, %s68
  %s70 = sld [smem:[#allocation5]]
  %s71 = sld [smem:[#allocation6]]
  %p72 = scmp.lt.s32.totalorder %s71, 0
  %s73 = scalar_select %p72, %s71, 0
  %s74 = smul.addr %s73, 4
  %s75 = scalar_lea.vmem %s3, %s74
  %s76 = sld [smem:[#allocation6]]
  %s77 = sld [smem:[#allocation5]]
  %p78 = scmp.lt.s32.totalorder %s77, 0
  %s79 = scalar_select %p78, %s77, 0
  %s80 = smul.addr %s79, 4
  %s81 = scalar_lea.vmem %s4, %s80
  %s82 = sld [smem:[#allocation5]]
  %s83 = sld [smem:[#allocation6]]
  %p84 = scmp.lt.s32.totalorder %s83, 0
  %s85 = scalar_select %p84, %s83, 0
  %s86 = smul.addr %s85, 4
  %s87 = scalar_lea.vmem %s5, %s86
  %s88 = sld [smem:[#allocation6]]
  %p89 = scmp.eq.s32.totalorder 0, 0
  // Predicated region
  $region18: #{tpu_custom_call.1} parent=0 // pred_check
    %p90 = pneg %p89
  $region19: #{tpu_custom_call.1} parent=0 // pred_check_branch
    %92 = sbr.rel (%p90) target = $region21
  $region20: #{tpu_custom_call.1} parent=0 // pred_region
    %vm93 = vcmask 3072
    %94 = vst.msk [vmem:[#allocation2] sm:$0xf] %vm93, 0.0
    %95 = vst.msk [vmem:[#allocation3] sm:$0xf] %vm93, 0.0
  $region21: #{tpu_custom_call.1} parent=0 // pred_fallthru
    _
  %v96 = vld [vmem:[%s69] sm:$0xf]
  %v97 = vld [vmem:[%s75] sm:$0xf]
  %v98 = vand.u32 2147483647, %v96
  %vm99 = vcmp.ge.f32.partialorder %v98, 1e-12
  %vm100 = vcmp.gt.f32.partialorder %v96, 0.0
  %v101 = vsel %vm100, 1.0, -1.0
  %v102 = vmul.f32 %v96, 1e+12
  %v103 = vsel %vm99, %v101, %v102
  %v104 = vand.u32 2147483647, %v97
  %vm105 = vcmp.ge.f32.partialorder %v104, 1e-12
  %vm106 = vcmp.gt.f32.partialorder %v97, 0.0
  %v107 = vsel %vm106, 1.0, -1.0
  %v108 = vmul.f32 %v97, 1e+12
  %v109 = vsel %vm105, %v107, %v108
  %v110 = vlaneseq
  %v111 = vshrl.u32 %v110, 7
  %v112 = vsub.s32 0, %v111
  %v113 = vrot.slane %v103, %v112
  %115 = vbcast.lane.b32.xlu0 %v113, 256
  %v116 = vpop.permute.xlu0 %115
  %v117 = vlaneseq
  %v118 = vshrl.u32 %v117, 7
  %v119 = vsub.s32 1, %v118
  %v120 = vrot.slane %v103, %v119
  %122 = vbcast.lane.b32.xlu0 %v120, 256
  %v123 = vpop.permute.xlu0 %122
  %v124 = vlaneseq
  %v125 = vshrl.u32 %v124, 7
  %v126 = vsub.s32 2, %v125
  %v127 = vrot.slane %v103, %v126
  %129 = vbcast.lane.b32.xlu0 %v127, 256
  %v130 = vpop.permute.xlu0 %129
  %v131 = vlaneseq
  %v132 = vshrl.u32 %v131, 7
  %v133 = vsub.s32 3, %v132
  %v134 = vrot.slane %v103, %v133
  %136 = vbcast.lane.b32.xlu0 %v134, 256
  %v137 = vpop.permute.xlu0 %136
  %v140 = vunpack.c.l.s4 1966171168
  %v141 = vunpack.c.0.s8 %v140
  %v142 = vlaneseq
  %v143 = vshrl.u32 %v142, 7
  %v144 = vsub.s32 %v141, %v143
  %v145 = vrot.slane %v109, %v144
  %v146 = vcombine.high %v145, %v145
  %v148 = vunpack.c.l.s4 1966171168
  %v149 = vunpack.c.0.s8 %v148
  %v150 = vlaneseq
  %v151 = vshrl.u32 %v150, 7
  %v152 = vsub.s32 %v149, %v151
  %v153 = vrot.slane %v145, %v152
  %v155 = vunpack.c.l.s4 1966171168
  %v156 = vunpack.c.0.s8 %v155
  %v157 = vlaneseq
  %v158 = vshrl.u32 %v157, 7
  %v159 = vsub.s32 %v156, %v158
  %v160 = vrot.slane %v146, %v159
  %v161 = vcombine.high %v153, %v153
  %v162 = vcombine.high %v160, %v160
  %v163 = vlaneseq
  %v164 = vshrl.u32 %v163, 7
  %v165 = vsub.s32 0, %v164
  %v166 = vrot.slane %v153, %v165
  %v167 = vlaneseq
  %v168 = vshrl.u32 %v167, 7
  %v169 = vsub.s32 0, %v168
  %v170 = vrot.slane %v160, %v169
  %v171 = vlaneseq
  %v172 = vshrl.u32 %v171, 7
  %v173 = vsub.s32 0, %v172
  %v174 = vrot.slane %v161, %v173
  %v175 = vlaneseq
  %v176 = vshrl.u32 %v175, 7
  %v177 = vsub.s32 0, %v176
  %v178 = vrot.slane %v162, %v177
  %v183 = vmul.f32 %v116, %v166
  %v184 = vmul.f32 %v123, %v170
  %v185 = vmul.f32 %v130, %v174
  %v186 = vmul.f32 %v137, %v178
  %v187 = vld [vmem:[%s81] sm:$0xf]
  %v188 = vlaneseq
  %v189 = vshrl.u32 %v188, 7
  %v190 = vsub.s32 0, %v189
  %v191 = vrot.slane %v187, %v190
  %193 = vbcast.lane.b32.xlu0 %v191, 256
  %v194 = vpop.permute.xlu0 %193
  %v195 = vlaneseq
  %v196 = vshrl.u32 %v195, 7
  %v197 = vsub.s32 1, %v196
  %v198 = vrot.slane %v187, %v197
  %200 = vbcast.lane.b32.xlu0 %v198, 256
  %v201 = vpop.permute.xlu0 %200
  %v202 = vlaneseq
  %v203 = vshrl.u32 %v202, 7
  %v204 = vsub.s32 2, %v203
  %v205 = vrot.slane %v187, %v204
  %207 = vbcast.lane.b32.xlu0 %v205, 256
  %v208 = vpop.permute.xlu0 %207
  %v209 = vlaneseq
  %v210 = vshrl.u32 %v209, 7
  %v211 = vsub.s32 3, %v210
  %v212 = vrot.slane %v187, %v211
  %214 = vbcast.lane.b32.xlu0 %v212, 256
  %v215 = vpop.permute.xlu0 %214
  %v216 = vld [vmem:[%s87] sm:$0xf]
  %v219 = vunpack.c.l.s4 1966171168
  %v220 = vunpack.c.0.s8 %v219
  %v221 = vlaneseq
  %v222 = vshrl.u32 %v221, 7
  %v223 = vsub.s32 %v220, %v222
  %v224 = vrot.slane %v216, %v223
  %v225 = vcombine.high %v224, %v224
  %v227 = vunpack.c.l.s4 1966171168
  %v228 = vunpack.c.0.s8 %v227
  %v229 = vlaneseq
  %v230 = vshrl.u32 %v229, 7
  %v231 = vsub.s32 %v228, %v230
  %v232 = vrot.slane %v224, %v231
  %v234 = vunpack.c.l.s4 1966171168
  %v235 = vunpack.c.0.s8 %v234
  %v236 = vlaneseq
  %v237 = vshrl.u32 %v236, 7
  %v238 = vsub.s32 %v235, %v237
  %v239 = vrot.slane %v225, %v238
  %v240 = vcombine.high %v232, %v232
  %v241 = vcombine.high %v239, %v239
  %v242 = vlaneseq
  %v243 = vshrl.u32 %v242, 7
  %v244 = vsub.s32 0, %v243
  %v245 = vrot.slane %v232, %v244
  %v246 = vlaneseq
  %v247 = vshrl.u32 %v246, 7
  %v248 = vsub.s32 0, %v247
  %v249 = vrot.slane %v239, %v248
  %v250 = vlaneseq
  %v251 = vshrl.u32 %v250, 7
  %v252 = vsub.s32 0, %v251
  %v253 = vrot.slane %v240, %v252
  %v254 = vlaneseq
  %v255 = vshrl.u32 %v254, 7
  %v256 = vsub.s32 0, %v255
  %v257 = vrot.slane %v241, %v256
  %vm262 = vcmp.eq.f32.partialorder %v194, %v245
  %vm263 = vcmp.eq.f32.partialorder %v201, %v249
  %vm264 = vcmp.eq.f32.partialorder %v208, %v253
  %vm265 = vcmp.eq.f32.partialorder %v215, %v257
  %s266 = sld [smem:[#allocation5]]
  %s267 = smul.u32 %s266, 8
  %s268 = sld [smem:[#allocation6]]
  %s269 = smul.u32 %s268, 8
  %v270 = vlaneseq
  %v271 = vshrl.u32 %v270, 7
  %v272 = vstv %s267
  %v273 = vadd.s32 %v272, %v271
  %v274 = vlaneseq
  %v275 = vand.u32 %v274, 127
  %v276 = vstv %s269
  %v277 = vadd.s32 %v276, %v275
  %vm278 = vcmp.gt.s32.totalorder %v277, %v273
  %vm279 = vcmp.lt.s32.totalorder %v277, 8
  %vm280 = vmand %vm278, %vm279
  %v281 = vsel %vm280, 1, 0
  %vm282 = vcmp.eq.s32.totalorder %v281, 1
  %vm283 = vmand %vm282, %vm262
  %vm284 = vmand %vm282, %vm263
  %vm285 = vmand %vm282, %vm264
  %vm286 = vmand %vm282, %vm265
  %vm287 = vmxor %vm262, 1
  %vm288 = vmxor %vm263, 1
  %vm289 = vmxor %vm264, 1
  %vm290 = vmxor %vm265, 1
  %vm291 = vmand %vm282, %vm287
  %vm292 = vmand %vm282, %vm288
  %vm293 = vmand %vm282, %vm289
  %vm294 = vmand %vm282, %vm290
  %v295 = vsub.f32 1.25, %v183
  %v296 = vsub.f32 1.25, %v184
  %v297 = vsub.f32 1.25, %v185
  %v298 = vsub.f32 1.25, %v186
  %v299 = vmax.f32 %v295, 0.0
  %v300 = vmax.f32 %v296, 0.0
  %v301 = vmax.f32 %v297, 0.0
  %v302 = vmax.f32 %v298, 0.0
  %v303 = vmul.f32 %v299, -32.0
  %v304 = vmul.f32 %v300, -32.0
  %v305 = vmul.f32 %v301, -32.0
  %v306 = vmul.f32 %v302, -32.0
  %v307 = vsub.f32 %v183, 0.75
  %v308 = vsub.f32 %v184, 0.75
  %v309 = vsub.f32 %v185, 0.75
  %v310 = vsub.f32 %v186, 0.75
  %v311 = vmul.f32 %v303, %v307
  %v312 = vmul.f32 %v304, %v308
  %v313 = vmul.f32 %v305, %v309
  %v314 = vmul.f32 %v306, %v310
  %v315 = vadd.f32 %v183, 0.25
  %v316 = vadd.f32 %v184, 0.25
  %v317 = vadd.f32 %v185, 0.25
  %v318 = vadd.f32 %v186, 0.25
  %v319 = vmax.f32 %v315, 0.0
  %v320 = vmax.f32 %v316, 0.0
  %v321 = vmax.f32 %v317, 0.0
  %v322 = vmax.f32 %v318, 0.0
  %v323 = vmul.f32 %v319, 32.0
  %v324 = vmul.f32 %v320, 32.0
  %v325 = vmul.f32 %v321, 32.0
  %v326 = vmul.f32 %v322, 32.0
  %v327 = vsub.f32 %v183, 0.25
  %v328 = vsub.f32 %v184, 0.25
  %v329 = vsub.f32 %v185, 0.25
  %v330 = vsub.f32 %v186, 0.25
  %v331 = vmul.f32 %v323, %v327
  %v332 = vmul.f32 %v324, %v328
  %v333 = vmul.f32 %v325, %v329
  %v334 = vmul.f32 %v326, %v330
  %v335 = vsel %vm291, %v331, 0.0
  %v336 = vsel %vm292, %v332, 0.0
  %v337 = vsel %vm293, %v333, 0.0
  %v338 = vsel %vm294, %v334, 0.0
  %v339 = vsel %vm283, %v311, %v335
  %v340 = vsel %vm284, %v312, %v336
  %v341 = vsel %vm285, %v313, %v337
  %v342 = vsel %vm286, %v314, %v338
  %v343 = vmul.f32 %v339, 1.442695
  %v344 = vpow.pop %v343
  %v345 = vmul.f32 %v340, 1.442695
  %v346 = vpow.pop %v345
  %v347 = vmul.f32 %v341, 1.442695
  %v348 = vpow.pop %v347
  %v349 = vmul.f32 %v342, 1.442695
  %v350 = vpow.pop %v349
  %v351 = vld [vmem:[#allocation2] sm:$0xf]
  %v352 = vsel %vm283, %v344, 0.0
  %v353 = vsel %vm284, %v346, 0.0
  %v354 = vsel %vm285, %v348, 0.0
  %v355 = vsel %vm286, %v350, 0.0
  %vm356 = vcmask 64512
  %v357 = vsel %vm356, %v352, 0.0
  %358 = vadd.xlane.f32.xlu0 %v357
  %v359 = vpop.xlane.xlu0 %358
  %v360 = vsel %vm356, %v353, 0.0
  %361 = vadd.xlane.f32.xlu0 %v360
  %v362 = vpop.xlane.xlu0 %361
  %v363 = vsel %vm356, %v354, 0.0
  %364 = vadd.xlane.f32.xlu0 %v363
  %v365 = vpop.xlane.xlu0 %364
  %v366 = vsel %vm356, %v355, 0.0
  %367 = vadd.xlane.f32.xlu0 %v366
  %v368 = vpop.xlane.xlu0 %367
  %v373 = vlaneseq
  %v374 = vshrl.u32 %v373, 7
  %v375 = vsub.s32 %v275, %v374
  %v376 = vrot.slane %v359, %v375
  %v377 = vlaneseq
  %v378 = vshrl.u32 %v377, 7
  %v379 = vsub.s32 %v275, %v378
  %v380 = vrot.slane %v362, %v379
  %v381 = vlaneseq
  %v382 = vshrl.u32 %v381, 7
  %v383 = vsub.s32 %v275, %v382
  %v384 = vrot.slane %v365, %v383
  %v385 = vlaneseq
  %v386 = vshrl.u32 %v385, 7
  %v387 = vsub.s32 %v275, %v386
  %v388 = vrot.slane %v368, %v387
  %vm389 = vcmask 1041409
  %v390 = vsel %vm389, %v380, %v376
  %vm391 = vcmask 1042434
  %v392 = vsel %vm391, %v384, %v390
  %vm393 = vcmask 1043459
  %v394 = vsel %vm393, %v388, %v392
  %vm396 = vcmask 60416
  %v397 = vsel %vm396, %v394, 0.0
  %398 = vadd.xlane.f32.xlu0 %v397
  %v399 = vpop.xlane.xlu0 %398
  %v400 = vadd.f32 %v351, %v399
  %vm401 = vcmask 3072
  %402 = vst.msk [vmem:[#allocation2] sm:$0xf] %vm401, %v400
  %v403 = vld [vmem:[#allocation3] sm:$0xf]
  %v404 = vsel %vm291, %v344, 0.0
  %v405 = vsel %vm292, %v346, 0.0
  %v406 = vsel %vm293, %v348, 0.0
  %v407 = vsel %vm294, %v350, 0.0
  %v408 = vsel %vm356, %v404, 0.0
  %409 = vadd.xlane.f32.xlu0 %v408
  %v410 = vpop.xlane.xlu0 %409
  %v411 = vsel %vm356, %v405, 0.0
  %412 = vadd.xlane.f32.xlu0 %v411
  %v413 = vpop.xlane.xlu0 %412
  %v414 = vsel %vm356, %v406, 0.0
  %415 = vadd.xlane.f32.xlu0 %v414
  %v416 = vpop.xlane.xlu0 %415
  %v417 = vsel %vm356, %v407, 0.0
  %418 = vadd.xlane.f32.xlu0 %v417
  %v419 = vpop.xlane.xlu0 %418
  %v424 = vlaneseq
  %v425 = vshrl.u32 %v424, 7
  %v426 = vsub.s32 %v275, %v425
  %v427 = vrot.slane %v410, %v426
  %v428 = vlaneseq
  %v429 = vshrl.u32 %v428, 7
  %v430 = vsub.s32 %v275, %v429
  %v431 = vrot.slane %v413, %v430
  %v432 = vlaneseq
  %v433 = vshrl.u32 %v432, 7
  %v434 = vsub.s32 %v275, %v433
  %v435 = vrot.slane %v416, %v434
  %v436 = vlaneseq
  %v437 = vshrl.u32 %v436, 7
  %v438 = vsub.s32 %v275, %v437
  %v439 = vrot.slane %v419, %v438
  %v440 = vsel %vm389, %v431, %v427
  %v441 = vsel %vm391, %v435, %v440
  %v442 = vsel %vm393, %v439, %v441
  %v444 = vsel %vm396, %v442, 0.0
  %445 = vadd.xlane.f32.xlu0 %v444
  %v446 = vpop.xlane.xlu0 %445
  %v447 = vadd.f32 %v403, %v446
  %448 = vst.msk [vmem:[#allocation3] sm:$0xf] %vm401, %v447
  // Predicated region
  $region22: #{tpu_custom_call.1} parent=0 // pred_check
    %p449 = pneg %p89
  $region23: #{tpu_custom_call.1} parent=0 // pred_check_branch
    %451 = sbr.rel (%p449) target = $region25
  $region24: #{tpu_custom_call.1} parent=0 // pred_region
    %v452 = vld [vmem:[#allocation2] sm:$0xf]
    %v453 = vld [vmem:[#allocation3] sm:$0xf]
    %v454 = vmul.f32 %v452, %v453
    %v455 = vadd.f32 %v454, 1.0
    %v456 = vlog2.pop %v455
    %v457 = vmul.f32 %v456, 0.6931472
    %458 = vst.msk [vmem:[%s6] sm:$0xf] %vm401, %v457
  $region25: #{tpu_custom_call.1} parent=0 // pred_fallthru
    _
  // Predicated region
  $region26: #{tpu_custom_call.1} parent=0 // pred_check
    _
  $region27: #{tpu_custom_call.1} parent=0 // pred_check_branch
    %460 = sbr.rel (0) target = $region29
  $region28: #{tpu_custom_call.1} parent=0 // pred_region
    _
  $region29: #{tpu_custom_call.1} parent=0 // pred_fallthru
    _
  // Predicated region
  $region30: #{tpu_custom_call.1} parent=0 // pred_check
    _
  $region31: #{tpu_custom_call.1} parent=0 // pred_check_branch
    %462 = sbr.rel (0) target = $region33
  $region32: #{tpu_custom_call.1} parent=0 // pred_region
    _
  $region33: #{tpu_custom_call.1} parent=0 // pred_fallthru
    _

</llo_original>
